<compile_context>
chip_gen: v7x
topology: tpu7x:2x2x1
jax: 0.10.0
libtpu: 0.0.40
codegen_flags: <defaults>
</compile_context>

<pallas_src>
import functools

import jax
import jax.numpy as jnp
from jax.experimental import pallas as pl
from jax.experimental.pallas import tpu as pltpu

EPS = 1e-5
LANE = 128


def _round_up(v, m):
    return (v + m - 1) // m * m


def _vmem_limit_bytes():
    # Per-generation scoped-VMEM budget: leave headroom on 64 MiB parts (v7x),
    # open up deeper buffers / bigger tiles on 128 MiB parts (v5e/v6e).
    try:
        cap = pltpu.get_tpu_info().vmem_capacity_bytes
    except Exception:
        cap = 128 * 1024 * 1024
    return (40 if cap <= 64 * 1024 * 1024 else 96) * 1024 * 1024


def _img_spec(*inner):
    """One image (leading batch dim squeezed) per grid step."""
    zeros = (0,) * len(inner)
    return pl.BlockSpec((None,) + tuple(inner), lambda n: (n,) + zeros)


def _full_spec(shape):
    """Whole array resident (weights / BN affines / masks), constant across the grid."""
    zeros = (0,) * len(shape)
    return pl.BlockSpec(tuple(shape), lambda n: zeros)


# --------------------------------------------------------------------------------------
# Kernels (one image per program; all lane-dense 2D [pixels, C_pad] slabs)
# --------------------------------------------------------------------------------------

def _conv1x1_kernel(*refs, apply_preact):
    """Optional (BN-affine + ReLU) -> 1x1 conv (single bf16 MXU matmul) + partial stats.

    apply_preact=False: refs = (x_ref, w_ref, y_ref, stats_ref)          [stage 1]
    apply_preact=True : refs = (x_ref, w_ref, scale_ref, shift_ref, y_ref, stats_ref)
                                                                          [stage 3]
    """
    if apply_preact:
        x_ref, w_ref, scale_ref, shift_ref, y_ref, stats_ref = refs
        h = jnp.maximum(x_ref[...].astype(jnp.float32) * scale_ref[...] + shift_ref[...],
                        0.0).astype(jnp.bfloat16)
    else:
        x_ref, w_ref, y_ref, stats_ref = refs
        h = x_ref[...]                                       # already bf16

    y = jnp.dot(h, w_ref[...], preferred_element_type=jnp.float32)   # (HW, Cout_p) f32

    # One-pass BN partial statistics (sum, sum of squares) in f32.
    s = jnp.sum(y, axis=0, keepdims=True)
    ss = jnp.sum(y * y, axis=0, keepdims=True)
    stats_ref[...] = jnp.concatenate([s, ss], axis=0)         # (2, Cout_p)

    y_ref[...] = y.astype(jnp.bfloat16)


def _conv3x3_kernel(y1_ref, w2_ref, m_ref, scale_ref, shift_ref, y2_ref, stats_ref, *, H, W):
    """BN1-affine + ReLU -> 3x3 conv (pad=1, stride=1) as 9 tap-wise accumulated bf16
    MXU matmuls; emits pre-BN2 result (bf16) + partial stats.

    y1_ref : (HW, Cmid_p) bf16      pre-BN1 conv1 output of one image
    w2_ref : (9, Cmid_p, Cmid_p) bf16   per-tap weight blocks, tap-major (dy outer, dx inner)
    m_ref  : (9, HW, 1) bf16        precomputed multiplicative boundary masks
    """
    HW = y1_ref.shape[0]

    h1 = jnp.maximum(y1_ref[...].astype(jnp.float32) * scale_ref[...] + shift_ref[...], 0.0)
    h1b = h1.astype(jnp.bfloat16)                             # cast once, roll/mask in bf16

    acc = None
    t = 0
    for dy in (-1, 0, 1):
        for dx in (-1, 0, 1):
            off = dy * W + dx                                 # flat-pixel offset of this tap
            if off == 0:
                tap = h1b                                     # centre tap: no shift, no mask
            else:
                shifted = pltpu.roll(h1b, (-off) % HW, axis=0)   # shifted[p] = h1b[p + off]
                tap = shifted * m_ref[t]                      # zero wrapped / out-of-image rows
            part = jnp.dot(tap, w2_ref[t], preferred_element_type=jnp.float32)
            acc = part if acc is None else acc + part
            t += 1

    s = jnp.sum(acc, axis=0, keepdims=True)
    ss = jnp.sum(acc * acc, axis=0, keepdims=True)
    stats_ref[...] = jnp.concatenate([s, ss], axis=0)
    y2_ref[...] = acc.astype(jnp.bfloat16)


def _finalize_kernel(y3_ref, x_ref, scale_ref, shift_ref, out_ref):
    """BN3-affine + ReLU, identity shortcut, final ReLU; bf16 lane-dense store."""
    h3 = jnp.maximum(y3_ref[...].astype(jnp.float32) * scale_ref[...] + shift_ref[...], 0.0)
    out = jnp.maximum(h3 + x_ref[...].astype(jnp.float32), 0.0)
    out_ref[...] = out.astype(out_ref.dtype)


# --------------------------------------------------------------------------------------
# Wrapper
# --------------------------------------------------------------------------------------

def bottleneck_forward(x_nchw, w1, w2, w3, g1, b1, g2, b2, g3, b3):
    """PyTorch-compatible wrapper. x_nchw: (N, Cin, H, W) f32; conv weights OIHW.

    Models the default Bottleneck construction: stride=1, downsample=None (identity
    shortcut), BatchNorm in training mode (batch mean / biased variance).
    """
    N, Cin, H, W = x_nchw.shape
    Cmid = w1.shape[0]
    Cout = w3.shape[0]
    assert Cout == Cin == 4 * Cmid, "identity shortcut requires Cin == 4*Cmid"
    HW = H * W
    P = N * HW
    assert HW % 8 == 0, "per-image pixel count must be sublane (8) aligned"

    Cin_p = _round_up(Cin, LANE)
    Cmid_p = _round_up(Cmid, LANE)

    # Activations: per-image, channels-last, lane-padded, bf16 (halved HBM traffic;
    # the residual add uses the same bf16 x — documented mixed-precision choice).
    x3d = jnp.transpose(x_nchw, (0, 2, 3, 1)).reshape(N, HW, Cin)
    x3d = jnp.pad(x3d, ((0, 0), (0, 0), (0, Cin_p - Cin))).astype(jnp.bfloat16)

    # Conv weights -> channel-matmul form, zero-padded to lane width, bf16.
    w1m = jnp.pad(w1[:, :, 0, 0].T,
                  ((0, Cin_p - Cin), (0, Cmid_p - Cmid))).astype(jnp.bfloat16)
    w2t = jnp.transpose(w2, (2, 3, 1, 0)).reshape(9, Cmid, Cmid)        # (tap, Ci, Co)
    w2t = jnp.pad(w2t, ((0, 0), (0, Cmid_p - Cmid), (0, Cmid_p - Cmid))).astype(jnp.bfloat16)
    w3m = jnp.pad(w3[:, :, 0, 0].T,
                  ((0, Cmid_p - Cmid), (0, Cin_p - Cin))).astype(jnp.bfloat16)

    # Precomputed per-tap boundary masks (same for every image): (9, HW, 1) bf16.
    ys = jnp.repeat(jnp.arange(H, dtype=jnp.int32), W)
    xs = jnp.tile(jnp.arange(W, dtype=jnp.int32), H)
    mlist = []
    for dy in (-1, 0, 1):
        for dx in (-1, 0, 1):
            mlist.append((ys + dy >= 0) & (ys + dy < H) & (xs + dx >= 0) & (xs + dx < W))
    masks = jnp.stack(mlist).astype(jnp.bfloat16).reshape(9, HW, 1)

    cparams = pltpu.CompilerParams(
        dimension_semantics=("parallel",),             # megacore over images on v7x
        vmem_limit_bytes=_vmem_limit_bytes())

    def bn_affine(stats, gamma, beta, cp):
        """Reduce per-image partial stats (tiny) and fold BN into a per-channel affine."""
        s = jnp.sum(stats[:, 0, :], axis=0)
        ss = jnp.sum(stats[:, 1, :], axis=0)
        mu = s / P
        var = jnp.maximum(ss / P - mu * mu, 0.0)       # one-pass biased variance, f32
        g = jnp.pad(gamma, (0, cp - gamma.shape[0]))   # padded lanes: gamma=0 -> scale=0
        b = jnp.pad(beta, (0, cp - beta.shape[0]))
        scale = g * jax.lax.rsqrt(var + EPS)
        shift = b - mu * scale
        return scale.reshape(1, cp), shift.reshape(1, cp)

    # ---- stage 1: conv1 (1x1) + BN1 partial stats --------------------------------
    y1, st1 = pl.pallas_call(
        functools.partial(_conv1x1_kernel, apply_preact=False),
        grid=(N,),
        in_specs=[_img_spec(HW, Cin_p), _full_spec((Cin_p, Cmid_p))],
        out_specs=[_img_spec(HW, Cmid_p), _img_spec(2, Cmid_p)],
        out_shape=[jax.ShapeDtypeStruct((N, HW, Cmid_p), jnp.bfloat16),
                   jax.ShapeDtypeStruct((N, 2, Cmid_p), jnp.float32)],
        compiler_params=cparams,
    )(x3d, w1m)
    sc1, sh1 = bn_affine(st1, g1, b1, Cmid_p)

    # ---- stage 2: BN1+ReLU -> conv2 (3x3, tap-wise accumulated matmuls) + stats --
    y2, st2 = pl.pallas_call(
        functools.partial(_conv3x3_kernel, H=H, W=W),
        grid=(N,),
        in_specs=[_img_spec(HW, Cmid_p), _full_spec((9, Cmid_p, Cmid_p)),
                  _full_spec((9, HW, 1)),
                  _full_spec((1, Cmid_p)), _full_spec((1, Cmid_p))],
        out_specs=[_img_spec(HW, Cmid_p), _img_spec(2, Cmid_p)],
        out_shape=[jax.ShapeDtypeStruct((N, HW, Cmid_p), jnp.bfloat16),
                   jax.ShapeDtypeStruct((N, 2, Cmid_p), jnp.float32)],
        compiler_params=cparams,
    )(y1, w2t, masks, sc1, sh1)
    sc2, sh2 = bn_affine(st2, g2, b2, Cmid_p)

    # ---- stage 3: BN2+ReLU -> conv3 (1x1 expansion) + BN3 partial stats ----------
    y3, st3 = pl.pallas_call(
        functools.partial(_conv1x1_kernel, apply_preact=True),
        grid=(N,),
        in_specs=[_img_spec(HW, Cmid_p), _full_spec((Cmid_p, Cin_p)),
                  _full_spec((1, Cmid_p)), _full_spec((1, Cmid_p))],
        out_specs=[_img_spec(HW, Cin_p), _img_spec(2, Cin_p)],
        out_shape=[jax.ShapeDtypeStruct((N, HW, Cin_p), jnp.bfloat16),
                   jax.ShapeDtypeStruct((N, 2, Cin_p), jnp.float32)],
        compiler_params=cparams,
    )(y2, w3m, sc2, sh2)
    sc3, sh3 = bn_affine(st3, g3, b3, Cin_p)

    # ---- stage 4: BN3+ReLU + identity shortcut + final ReLU (bf16 store) ---------
    out3d = pl.pallas_call(
        _finalize_kernel,
        grid=(N,),
        in_specs=[_img_spec(HW, Cin_p), _img_spec(HW, Cin_p),
                  _full_spec((1, Cin_p)), _full_spec((1, Cin_p))],
        out_specs=_img_spec(HW, Cin_p),
        out_shape=jax.ShapeDtypeStruct((N, HW, Cin_p), jnp.bfloat16),
        compiler_params=cparams,
    )(y3, x3d, sc3, sh3)

    out = out3d[:, :, :Cin].astype(jnp.float32).reshape(N, H, W, Cin)
    return jnp.transpose(out, (0, 3, 1, 2))


# --------------------------------------------------------------------------------------
# Pure-JAX reference (mirrors the PyTorch module exactly, f32)
# --------------------------------------------------------------------------------------

def bottleneck_reference(x, w1, w2, w3, g1, b1, g2, b2, g3, b3):
    def conv(h, w, pad):
        return jax.lax.conv_general_dilated(
            h, w, window_strides=(1, 1), padding=[(pad, pad), (pad, pad)],
            dimension_numbers=("NCHW", "OIHW", "NCHW"))

    def bn_relu(h, g, b):
        mu = h.mean(axis=(0, 2, 3), keepdims=True)
        var = ((h - mu) ** 2).mean(axis=(0, 2, 3), keepdims=True)
        hn = (h - mu) / jnp.sqrt(var + EPS)
        return jnp.maximum(hn * g.reshape(1, -1, 1, 1) + b.reshape(1, -1, 1, 1), 0.0)

    out = bn_relu(conv(x, w1, 0), g1, b1)
    out = bn_relu(conv(out, w2, 1), g2, b2)
    out = bn_relu(conv(out, w3, 0), g3, b3)
    return jnp.maximum(out + x, 0.0)


if __name__ == "__main__":
    key = jax.random.PRNGKey(0)
    ks = jax.random.split(key, 10)

    # Bottleneck(in_channels=32, out_channels=8): expansion 4 keeps identity shortcut valid.
    N, Cin, H, W = 2, 32, 16, 16
    Cmid = Cin // 4

    x = jax.random.normal(ks[0], (N, Cin, H, W), jnp.float32)
    w1 = 0.2 * jax.random.normal(ks[1], (Cmid, Cin, 1, 1), jnp.float32)   # conv1 (OIHW)
    w2 = 0.2 * jax.random.normal(ks[2], (Cmid, Cmid, 3, 3), jnp.float32)  # conv2 (OIHW)
    w3 = 0.2 * jax.random.normal(ks[3], (Cin, Cmid, 1, 1), jnp.float32)   # conv3 (OIHW)
    g1 = 1.0 + 0.1 * jax.random.normal(ks[4], (Cmid,), jnp.float32)
    b1 = 0.1 * jax.random.normal(ks[5], (Cmid,), jnp.float32)
    g2 = 1.0 + 0.1 * jax.random.normal(ks[6], (Cmid,), jnp.float32)
    b2 = 0.1 * jax.random.normal(ks[7], (Cmid,), jnp.float32)
    g3 = 1.0 + 0.1 * jax.random.normal(ks[8], (Cin,), jnp.float32)
    b3 = 0.1 * jax.random.normal(ks[9], (Cin,), jnp.float32)

    out = jax.block_until_ready(
        bottleneck_forward(x, w1, w2, w3, g1, b1, g2, b2, g3, b3))
    ref = bottleneck_reference(x, w1, w2, w3, g1, b1, g2, b2, g3, b3)

    assert out.shape == (N, Cin, H, W) and out.dtype == jnp.float32
    # bf16 MXU operands, bf16 inter-stage activations and bf16 output store (all f32
    # accumulation) vs a pure-f32 reference -> mixed-precision tolerance.
    if not jnp.allclose(out, ref, atol=6e-2, rtol=6e-2):
        raise AssertionError(
            f"Pallas kernel mismatch vs reference, max abs diff = "
            f"{float(jnp.max(jnp.abs(out - ref)))}")

    print("KERNEL_OK")
</pallas_src>

<mosaic_0001>
module attributes {stable_mosaic.version = 11 : i64} {
  func.func @_conv1x1_kernel(%arg0: i32, %arg1: memref<1x256x128xbf16, #tpu.memory_space<vmem>>, %arg2: memref<128x128xbf16, #tpu.memory_space<vmem>>, %arg3: memref<1x256x128xbf16, #tpu.memory_space<vmem>>, %arg4: memref<1x2x128xf32, #tpu.memory_space<vmem>>) attributes {dimension_semantics = [#tpu.dimension_semantics<parallel>], iteration_bounds = array<i64: 2>, scalar_prefetch = 0 : i64, scratch_operands = 0 : i64, tpu.core_type = #tpu.core_type<tc>, window_params = [{transform_indices = @transform_0, window_bounds = array<i64: 1, 256, 128>}, {pipeline_mode = #tpu.pipeline_mode<synchronous>, transform_indices = @transform_1, window_bounds = array<i64: 128, 128>}, {transform_indices = @transform_2, window_bounds = array<i64: 1, 256, 128>}, {transform_indices = @transform_3, window_bounds = array<i64: 1, 2, 128>}]} {
    %c0 = arith.constant 0 : index
    %c0_0 = arith.constant 0 : index
    %c0_1 = arith.constant 0 : index
    %0 = vector.load %arg1[%c0, %c0_0, %c0_1] : memref<1x256x128xbf16, #tpu.memory_space<vmem>>, vector<1x256x128xbf16>
    %1 = vector.shape_cast %0 : vector<1x256x128xbf16> to vector<256x128xbf16>
    %c0_2 = arith.constant 0 : index
    %c0_3 = arith.constant 0 : index
    %2 = vector.load %arg2[%c0_2, %c0_3] : memref<128x128xbf16, #tpu.memory_space<vmem>>, vector<128x128xbf16>
    %cst = arith.constant dense<0.000000e+00> : vector<256x128xf32>
    %3 = tpu.matmul %1, %2, %cst {dimension_numbers = #tpu.dot_dimension_numbers<[1], [0], [0], [1], [0, 0, 1, 1], [], []>} : vector<256x128xbf16>, vector<128x128xbf16>, vector<256x128xf32> -> vector<256x128xf32>
    %cst_4 = arith.constant dense<0.000000e+00> : vector<128xf32>
    %4 = vector.multi_reduction <add>, %3, %cst_4 [0] : vector<256x128xf32> to vector<128xf32>
    %5 = vector.shape_cast %4 : vector<128xf32> to vector<1x128xf32>
    %6 = arith.mulf %3, %3 : vector<256x128xf32>
    %cst_5 = arith.constant dense<0.000000e+00> : vector<128xf32>
    %7 = vector.multi_reduction <add>, %6, %cst_5 [0] : vector<256x128xf32> to vector<128xf32>
    %8 = vector.shape_cast %7 : vector<128xf32> to vector<1x128xf32>
    %9 = tpu.concatenate %5, %8 in 0 : vector<1x128xf32>, vector<1x128xf32> -> vector<2x128xf32>
    %c0_6 = arith.constant 0 : index
    %c0_7 = arith.constant 0 : index
    %c0_8 = arith.constant 0 : index
    %10 = vector.load %arg4[%c0_6, %c0_7, %c0_8] : memref<1x2x128xf32, #tpu.memory_space<vmem>>, vector<1x2x128xf32>
    %11 = vector.shape_cast %10 : vector<1x2x128xf32> to vector<2x128xf32>
    %12 = vector.shape_cast %9 : vector<2x128xf32> to vector<1x2x128xf32>
    tpu.vector_store %arg4[%c0_6, %c0_7, %c0_8], %12 {strides = array<i32>} : memref<1x2x128xf32, #tpu.memory_space<vmem>>, vector<1x2x128xf32>,
    %13 = arith.truncf %3 : vector<256x128xf32> to vector<256x128xbf16>
    %c0_9 = arith.constant 0 : index
    %c0_10 = arith.constant 0 : index
    %c0_11 = arith.constant 0 : index
    %14 = vector.load %arg3[%c0_9, %c0_10, %c0_11] : memref<1x256x128xbf16, #tpu.memory_space<vmem>>, vector<1x256x128xbf16>
    %15 = vector.shape_cast %14 : vector<1x256x128xbf16> to vector<256x128xbf16>
    %16 = vector.shape_cast %13 : vector<256x128xbf16> to vector<1x256x128xbf16>
    tpu.vector_store %arg3[%c0_9, %c0_10, %c0_11], %16 {strides = array<i32>} : memref<1x256x128xbf16, #tpu.memory_space<vmem>>, vector<1x256x128xbf16>,
    return
  }
  func.func @transform_0(%arg0: i32) -> (i32, i32, i32) {
    %c0_i32 = arith.constant 0 : i32
    %c0_i32_0 = arith.constant 0 : i32
    %c0_i32_1 = arith.constant 0 : i32
    return %arg0, %c0_i32, %c0_i32_0 : i32, i32, i32
  }
  func.func @transform_1(%arg0: i32) -> (i32, i32) {
    %c0_i32 = arith.constant 0 : i32
    %c0_i32_0 = arith.constant 0 : i32
    %c0_i32_1 = arith.constant 0 : i32
    return %c0_i32, %c0_i32_0 : i32, i32
  }
  func.func @transform_2(%arg0: i32) -> (i32, i32, i32) {
    %c0_i32 = arith.constant 0 : i32
    %c0_i32_0 = arith.constant 0 : i32
    %c0_i32_1 = arith.constant 0 : i32
    return %arg0, %c0_i32, %c0_i32_0 : i32, i32, i32
  }
  func.func @transform_3(%arg0: i32) -> (i32, i32, i32) {
    %c0_i32 = arith.constant 0 : i32
    %c0_i32_0 = arith.constant 0 : i32
    %c0_i32_1 = arith.constant 0 : i32
    return %arg0, %c0_i32, %c0_i32_0 : i32, i32, i32
  }
}

</mosaic_0001>

<llo_original>
// kernel: tpu_custom_call.1
$region0: #{tpu_custom_call.1}
  #allocation0 [shape = 'u32[]', space=smem, size = 0x4, offset = 0x4, fixed_abs, tag = 'smem constant byte address 0x4 - core index']
  #allocation1 [shape = 'u32[144,128]{1,0:T(1,128)}', space=vmem, size = 0x12000, scoped, tag = 'internal scratch']
  %s0 = inlined_call_operand.hbm [shape: bf16[2,256,128], index: 0, kind: input, shape index: {}]
  %s1 = inlined_call_operand.hbm [shape: bf16[128,128], index: 1, kind: input, shape index: {}]
  %s2 = inlined_call_operand.hbm [shape: bf16[2,256,128], index: 2, kind: output, shape index: {0}]
  %s3 = inlined_call_operand.hbm [shape: f32[2,2,128], index: 3, kind: output, shape index: {1}]
  %4 = xla_tuple %s2, %s3
  %s5 = sld [smem:[#allocation0]]
  $region57: #{tpu_custom_call.1} parent=0
    _
  %s7 = ssub.s32 1, %s5
  %s8 = scalar_select 0, %s7, %s5
  $region1: #{tpu_custom_call.1} parent=0
    #allocation2 [shape = 'u8[131072]{0}', space=vmem, size = 0x20000, scoped, tag = 'input window, operand 0']
    #allocation3 [shape = 's32[2]{0}', space=sflag, size = 0x8, scoped, tag = 'scoped memory for tpu_custom_call.1']
    #allocation4 [shape = 's32[2]{0}', space=sflag, size = 0x8, scoped, tag = 'scoped memory for tpu_custom_call.1']
    #allocation5 [shape = 'u8[32768]{0}', space=vmem, size = 0x8000, scoped, tag = 'input window, operand 1, single buffered']
    #allocation6 [shape = 's32[1]{0}', space=sflag, size = 0x4, scoped, tag = 'scoped memory for tpu_custom_call.1']
    #allocation7 [shape = 'u8[131072]{0}', space=vmem, size = 0x20000, scoped, tag = 'output window, operand 0']
    #allocation8 [shape = 'u8[2048]{0}', space=vmem, size = 0x800, scoped, tag = 'output window, operand 1']
    #allocation9 [shape = 's32[2]{0}', space=sflag, size = 0x8, scoped, tag = 'scoped memory for tpu_custom_call.1']
    %9 = vsyncpa [#allocation3], 0
    %s10 = scalar_lea.sflag [#allocation3], 1
    %11 = vsyncpa %s10, 0
    %12 = vsyncpa [#allocation6], 0
    %13 = vsyncpa [#allocation4], 0
    %s14 = scalar_lea.sflag [#allocation4], 1
    %15 = vsyncpa %s14, 0
    %16 = vsyncpa [#allocation9], 0
    %s17 = scalar_lea.sflag [#allocation9], 1
    %18 = vsyncpa %s17, 0
    loop: start=0, step=1, limit=4
    $region2: #{tpu_custom_call.1} parent=1 // loop_pre_header
      _
    $region3: #{tpu_custom_call.1} parent=1 // loop_header
      %s20 = sphi 0, %s24
      %p21 = scmp.ge.s32.totalorder %s20, 4
      %s30 = sphi 0, %s32
      %s33 = sphi 0, %s30
      %s34 = sphi 0, %s33
      %s50 = sphi 0, %s34
      %s54 = sphi 0, %s54
      %s56 = sphi 0, %s54
      %s57 = sphi 0, %s56
      %s71 = sphi 0, %s57
      %s77 = sphi 0, %s79
      %s80 = sphi 0, %s77
      %s81 = sphi 0, %s80
      %s97 = sphi 0, %s81
      %s103 = sphi 0, %s105
      %s106 = sphi 0, %s103
      %s107 = sphi 0, %s106
      %s123 = sphi 0, %s107
    $region4: #{tpu_custom_call.1} parent=1 // loop_header_branch
      %23 = sbr.rel (%p21) target = $region8
    $region5: #{tpu_custom_call.1} parent=1 // loop_body
      %s25 = ssub.s32 %s20, 1
      %s26 = ssub.s32 %s20, 2
      %s27 = sadd.s32 %s20, 1
      %s28 = ssub.s32 %s20, %s27
      %p29 = scmp.eq.s32.totalorder %s28, 0
      %s31 = sadd.s32 %s30, 1
      %s32 = scalar_select %p29, %s30, %s31
      %p35 = pneg %p29
      %p36 = scmp.eq.s32.totalorder %s20, 1
      %p37 = por %p35, %p36
      %p38 = scmp.ne.s32.totalorder %s30, %s33
      %p39 = scmp.eq.s32.totalorder %s20, 0
      %p40 = por %p38, %p39
      %p41 = scmp.ne.s32.totalorder %s30, %s33
      %p42 = scmp.eq.s32.totalorder %s25, 1
      %p43 = por %p41, %p42
      %p44 = scmp.ne.s32.totalorder %s33, %s34
      %p45 = scmp.eq.s32.totalorder %s25, 0
      %p46 = por %p44, %p45
      %p47 = scmp.ne.s32.totalorder %s33, %s34
      %p48 = scmp.eq.s32.totalorder %s26, 1
      %p49 = por %p47, %p48
      %p51 = scmp.ne.s32.totalorder %s34, %s50
      %p52 = scmp.eq.s32.totalorder %s26, 0
      %p53 = por %p51, %p52
      %s55 = sadd.s32 %s54, 1
      %p58 = scmp.eq.s32.totalorder %s20, 1
      %p59 = scmp.ne.s32.totalorder %s54, %s56
      %p60 = scmp.eq.s32.totalorder %s20, 0
      %p61 = por %p59, %p60
      %p62 = scmp.ne.s32.totalorder %s54, %s56
      %p63 = scmp.eq.s32.totalorder %s25, 1
      %p64 = por %p62, %p63
      %p65 = scmp.ne.s32.totalorder %s56, %s57
      %p66 = scmp.eq.s32.totalorder %s25, 0
      %p67 = por %p65, %p66
      %p68 = scmp.ne.s32.totalorder %s56, %s57
      %p69 = scmp.eq.s32.totalorder %s26, 1
      %p70 = por %p68, %p69
      %p72 = scmp.ne.s32.totalorder %s57, %s71
      %p73 = scmp.eq.s32.totalorder %s26, 0
      %p74 = por %p72, %p73
      %s75 = ssub.s32 %s20, %s27
      %p76 = scmp.eq.s32.totalorder %s75, 0
      %s78 = sadd.s32 %s77, 1
      %s79 = scalar_select %p76, %s77, %s78
      %p82 = pneg %p76
      %p83 = scmp.eq.s32.totalorder %s20, 1
      %p84 = por %p82, %p83
      %p85 = scmp.ne.s32.totalorder %s77, %s80
      %p86 = scmp.eq.s32.totalorder %s20, 0
      %p87 = por %p85, %p86
      %p88 = scmp.ne.s32.totalorder %s77, %s80
      %p89 = scmp.eq.s32.totalorder %s25, 1
      %p90 = por %p88, %p89
      %p91 = scmp.ne.s32.totalorder %s80, %s81
      %p92 = scmp.eq.s32.totalorder %s25, 0
      %p93 = por %p91, %p92
      %p94 = scmp.ne.s32.totalorder %s80, %s81
      %p95 = scmp.eq.s32.totalorder %s26, 1
      %p96 = por %p94, %p95
      %p98 = scmp.ne.s32.totalorder %s81, %s97
      %p99 = scmp.eq.s32.totalorder %s26, 0
      %p100 = por %p98, %p99
      %s101 = ssub.s32 %s20, %s27
      %p102 = scmp.eq.s32.totalorder %s101, 0
      %s104 = sadd.s32 %s103, 1
      %s105 = scalar_select %p102, %s103, %s104
      %p108 = pneg %p102
      %p109 = scmp.eq.s32.totalorder %s20, 1
      %p110 = por %p108, %p109
      %p111 = scmp.ne.s32.totalorder %s103, %s106
      %p112 = scmp.eq.s32.totalorder %s20, 0
      %p113 = por %p111, %p112
      %p114 = scmp.ne.s32.totalorder %s103, %s106
      %p115 = scmp.eq.s32.totalorder %s25, 1
      %p116 = por %p114, %p115
      %p117 = scmp.ne.s32.totalorder %s106, %s107
      %p118 = scmp.eq.s32.totalorder %s25, 0
      %p119 = por %p117, %p118
      %p120 = scmp.ne.s32.totalorder %s106, %s107
      %p121 = scmp.eq.s32.totalorder %s26, 1
      %p122 = por %p120, %p121
      %p124 = scmp.ne.s32.totalorder %s107, %s123
      %p125 = scmp.eq.s32.totalorder %s26, 0
      %p126 = por %p124, %p125
      %p127 = scmp.le.s32.totalorder 1, %s20
      %p128 = scmp.lt.s32.totalorder %s20, 3
      %p129 = pnand %p127, %p128
      %p130 = pneg %p129
      // Predicated region
      $region9: #{tpu_custom_call.1} parent=5 // pred_check
        _
      $region10: #{tpu_custom_call.1} parent=5 // pred_check_branch
        %132 = sbr.rel (%p129) target = $region12
      $region11: #{tpu_custom_call.1} parent=5 // pred_region
        %s133 = ssub.s32 %s20, 1
        // Predicated region
        $region13: #{tpu_custom_call.1} parent=11 // pred_check
          %p134 = pneg %p67
        $region14: #{tpu_custom_call.1} parent=11 // pred_check_branch
          %136 = sbr.rel (%p134) target = $region16
        $region15: #{tpu_custom_call.1} parent=11 // pred_region
          %s138 = ssub.s32 1024, 1024
          %139 = vsyncadd [#allocation6], %s138
          %s140 = sshll.u32 [#allocation5], 4
          %s141 = int_to_ptr.vmem [resolvable:$true] %s140
          %146 = dma.hbm_to_vmem [thread:$0]  %s1, 1024, %s141, [#allocation6], 64, 64, 4
        $region16: #{tpu_custom_call.1} parent=11 // pred_fallthru
          _
      $region12: #{tpu_custom_call.1} parent=5 // pred_fallthru
        _
      %p147 = scmp.lt.s32.totalorder %s20, 2
      // Predicated region
      $region17: #{tpu_custom_call.1} parent=5 // pred_check
        %p148 = pneg %p147
      $region18: #{tpu_custom_call.1} parent=5 // pred_check_branch
        %150 = sbr.rel (%p148) target = $region20
      $region19: #{tpu_custom_call.1} parent=5 // pred_region
        // Predicated region
        $region21: #{tpu_custom_call.1} parent=19 // pred_check
          %p151 = pneg %p40
        $region22: #{tpu_custom_call.1} parent=19 // pred_check_branch
          %153 = sbr.rel (%p151) target = $region24
        $region23: #{tpu_custom_call.1} parent=19 // pred_region
          %s154 = sand.u32 %s30, 1
          %s155 = scalar_lea.sflag [#allocation3], %s154
          %s156 = sand.u32 %s30, 1
          %s157 = smul.addr %s156, 128
          %s158 = scalar_lea.vmem [#allocation2], %s157
          %s160 = ssub.s32 2048, 2048
          %161 = vsyncadd %s155, %s160
          %s162 = smul.addr %s20, 32
          %s163 = smul.addr %s162, 64
          %s164 = scalar_lea.hbm %s0, %s163
          %s165 = sshll.u32 %s158, 4
          %s166 = int_to_ptr.vmem [resolvable:$true] %s165
          %171 = dma.hbm_to_vmem [thread:$0]  %s164, 2048, %s166, %s155, 64, 64, 4
        $region24: #{tpu_custom_call.1} parent=19 // pred_fallthru
          _
      $region20: #{tpu_custom_call.1} parent=5 // pred_fallthru
        _
      %p172 = scmp.le.s32.totalorder 1, %s20
      %p173 = scmp.lt.s32.totalorder %s20, 3
      %p174 = pnand %p172, %p173
      %p175 = pneg %p174
      // Predicated region
      $region25: #{tpu_custom_call.1} parent=5 // pred_check
        _
      $region26: #{tpu_custom_call.1} parent=5 // pred_check_branch
        %177 = sbr.rel (%p174) target = $region28
      $region27: #{tpu_custom_call.1} parent=5 // pred_region
        %s178 = ssub.s32 %s20, 1
        %s179 = sand.u32 %s33, 1
        %s180 = scalar_lea.sflag [#allocation3], %s179
        %s181 = sand.u32 %s33, 1
        %s182 = smul.addr %s181, 128
        %s183 = scalar_lea.vmem [#allocation2], %s182
        // Predicated region
        $region29: #{tpu_custom_call.1} parent=27 // pred_check
          %p184 = pneg %p46
        $region30: #{tpu_custom_call.1} parent=27 // pred_check_branch
          %186 = sbr.rel (%p184) target = $region32
        $region31: #{tpu_custom_call.1} parent=27 // pred_region
          %187 = dma.done %s180, 2048
        $region32: #{tpu_custom_call.1} parent=27 // pred_fallthru
          _
        // Predicated region
        $region33: #{tpu_custom_call.1} parent=27 // pred_check
          %p188 = pneg %p67
        $region34: #{tpu_custom_call.1} parent=27 // pred_check_branch
          %190 = sbr.rel (%p188) target = $region36
        $region35: #{tpu_custom_call.1} parent=27 // pred_region
          %191 = dma.done [#allocation6], 1024
        $region36: #{tpu_custom_call.1} parent=27 // pred_fallthru
          _
        %s192 = sand.u32 %s33, 1
        %s193 = scalar_lea.sflag [#allocation3], %s192
        %s194 = sand.u32 %s33, 1
        %s195 = smul.addr %s194, 128
        %s196 = scalar_lea.vmem [#allocation2], %s195
        %p197 = pneg %p46
        %p198 = pneg %p43
        %p199 = pneg %p67
        %p200 = pneg %p64
        %p201 = pneg %p93
        %p202 = pneg %p90
        %s203 = sand.u32 %s80, 1
        %s204 = scalar_lea.sflag [#allocation4], %s203
        %s205 = sand.u32 %s80, 1
        %s206 = smul.addr %s205, 128
        %s207 = scalar_lea.vmem [#allocation7], %s206
        %p208 = pneg %p119
        %p209 = pneg %p116
        %s210 = sand.u32 %s106, 1
        %s211 = scalar_lea.sflag [#allocation9], %s210
        %s212 = sand.u32 %s106, 1
        %s213 = smul.addr %s212, 2
        %s214 = scalar_lea.vmem [#allocation8], %s213
        %v216 = vld [vmem:[%s183] sm:$0xf]
        %v217 = vld [vmem:[%s183 + $0x4] sm:$0xf]
        %v218 = vld [vmem:[%s183 + $0x8] sm:$0xf]
        %v219 = vld [vmem:[%s183 + $0xc] sm:$0xf]
        %v220 = vld [vmem:[%s183 + $0x10] sm:$0xf]
        %v221 = vld [vmem:[%s183 + $0x14] sm:$0xf]
        %v222 = vld [vmem:[%s183 + $0x18] sm:$0xf]
        %v223 = vld [vmem:[%s183 + $0x1c] sm:$0xf]
        %v224 = vld [vmem:[%s183 + $0x20] sm:$0xf]
        %v225 = vld [vmem:[%s183 + $0x24] sm:$0xf]
        %v226 = vld [vmem:[%s183 + $0x28] sm:$0xf]
        %v227 = vld [vmem:[%s183 + $0x2c] sm:$0xf]
        %v228 = vld [vmem:[%s183 + $0x30] sm:$0xf]
        %v229 = vld [vmem:[%s183 + $0x34] sm:$0xf]
        %v230 = vld [vmem:[%s183 + $0x38] sm:$0xf]
        %v231 = vld [vmem:[%s183 + $0x3c] sm:$0xf]
        %v232 = vld [vmem:[%s183 + $0x40] sm:$0xf]
        %v233 = vld [vmem:[%s183 + $0x44] sm:$0xf]
        %v234 = vld [vmem:[%s183 + $0x48] sm:$0xf]
        %v235 = vld [vmem:[%s183 + $0x4c] sm:$0xf]
        %v236 = vld [vmem:[%s183 + $0x50] sm:$0xf]
        %v237 = vld [vmem:[%s183 + $0x54] sm:$0xf]
        %v238 = vld [vmem:[%s183 + $0x58] sm:$0xf]
        %v239 = vld [vmem:[%s183 + $0x5c] sm:$0xf]
        %v240 = vld [vmem:[%s183 + $0x60] sm:$0xf]
        %v241 = vld [vmem:[%s183 + $0x64] sm:$0xf]
        %v242 = vld [vmem:[%s183 + $0x68] sm:$0xf]
        %v243 = vld [vmem:[%s183 + $0x6c] sm:$0xf]
        %v244 = vld [vmem:[%s183 + $0x70] sm:$0xf]
        %v245 = vld [vmem:[%s183 + $0x74] sm:$0xf]
        %v246 = vld [vmem:[%s183 + $0x78] sm:$0xf]
        %v247 = vld [vmem:[%s183 + $0x7c] sm:$0xf]
        %v248 = vld [vmem:[#allocation5] sm:$0xf]
        %v249 = vld [vmem:[#allocation5 + $0x4] sm:$0xf]
        %v250 = vld [vmem:[#allocation5 + $0x8] sm:$0xf]
        %v251 = vld [vmem:[#allocation5 + $0xc] sm:$0xf]
        %v252 = vld [vmem:[#allocation5 + $0x10] sm:$0xf]
        %v253 = vld [vmem:[#allocation5 + $0x14] sm:$0xf]
        %v254 = vld [vmem:[#allocation5 + $0x18] sm:$0xf]
        %v255 = vld [vmem:[#allocation5 + $0x1c] sm:$0xf]
        %v256 = vld [vmem:[#allocation5 + $0x20] sm:$0xf]
        %v257 = vld [vmem:[#allocation5 + $0x24] sm:$0xf]
        %v258 = vld [vmem:[#allocation5 + $0x28] sm:$0xf]
        %v259 = vld [vmem:[#allocation5 + $0x2c] sm:$0xf]
        %v260 = vld [vmem:[#allocation5 + $0x30] sm:$0xf]
        %v261 = vld [vmem:[#allocation5 + $0x34] sm:$0xf]
        %v262 = vld [vmem:[#allocation5 + $0x38] sm:$0xf]
        %v263 = vld [vmem:[#allocation5 + $0x3c] sm:$0xf]
        %v296 = vunpack.c.l.b16 %v216
        %v297 = vunpack.c.l.b16 %v217
        %v298 = vunpack.c.l.b16 %v218
        %v299 = vunpack.c.l.b16 %v219
        %v300 = vunpack.c.l.b16 %v220
        %v301 = vunpack.c.l.b16 %v221
        %v302 = vunpack.c.l.b16 %v222
        %v303 = vunpack.c.l.b16 %v223
        %v304 = vunpack.c.l.b16 %v224
        %v305 = vunpack.c.l.b16 %v225
        %v306 = vunpack.c.l.b16 %v226
        %v307 = vunpack.c.l.b16 %v227
        %v308 = vunpack.c.l.b16 %v228
        %v309 = vunpack.c.l.b16 %v229
        %v310 = vunpack.c.l.b16 %v230
        %v311 = vunpack.c.l.b16 %v231
        %v312 = vunpack.c.l.b16 %v232
        %v313 = vunpack.c.l.b16 %v233
        %v314 = vunpack.c.l.b16 %v234
        %v315 = vunpack.c.l.b16 %v235
        %v316 = vunpack.c.l.b16 %v236
        %v317 = vunpack.c.l.b16 %v237
        %v318 = vunpack.c.l.b16 %v238
        %v319 = vunpack.c.l.b16 %v239
        %v320 = vunpack.c.l.b16 %v240
        %v321 = vunpack.c.l.b16 %v241
        %v322 = vunpack.c.l.b16 %v242
        %v323 = vunpack.c.l.b16 %v243
        %v324 = vunpack.c.l.b16 %v244
        %v325 = vunpack.c.l.b16 %v245
        %v326 = vunpack.c.l.b16 %v246
        %v327 = vunpack.c.l.b16 %v247
        %v328 = vpack.c.b16 %v297, %v296
        %v329 = vpack.c.b16 %v299, %v298
        %v330 = vpack.c.b16 %v301, %v300
        %v331 = vpack.c.b16 %v303, %v302
        %v332 = vpack.c.b16 %v305, %v304
        %v333 = vpack.c.b16 %v307, %v306
        %v334 = vpack.c.b16 %v309, %v308
        %v335 = vpack.c.b16 %v311, %v310
        %v336 = vpack.c.b16 %v313, %v312
        %v337 = vpack.c.b16 %v315, %v314
        %v338 = vpack.c.b16 %v317, %v316
        %v339 = vpack.c.b16 %v319, %v318
        %v340 = vpack.c.b16 %v321, %v320
        %v341 = vpack.c.b16 %v323, %v322
        %v342 = vpack.c.b16 %v325, %v324
        %v343 = vpack.c.b16 %v327, %v326
        %v376 = vunpack.c.l.b16 %v248
        %v377 = vunpack.c.l.b16 %v249
        %v378 = vunpack.c.l.b16 %v250
        %v379 = vunpack.c.l.b16 %v251
        %v380 = vunpack.c.l.b16 %v252
        %v381 = vunpack.c.l.b16 %v253
        %v382 = vunpack.c.l.b16 %v254
        %v383 = vunpack.c.l.b16 %v255
        %v384 = vunpack.c.l.b16 %v256
        %v385 = vunpack.c.l.b16 %v257
        %v386 = vunpack.c.l.b16 %v258
        %v387 = vunpack.c.l.b16 %v259
        %v388 = vunpack.c.l.b16 %v260
        %v389 = vunpack.c.l.b16 %v261
        %v390 = vunpack.c.l.b16 %v262
        %v391 = vunpack.c.l.b16 %v263
        %v392 = vpack.c.b16 %v377, %v376
        %v393 = vpack.c.b16 %v379, %v378
        %v394 = vpack.c.b16 %v381, %v380
        %v395 = vpack.c.b16 %v383, %v382
        %v396 = vpack.c.b16 %v385, %v384
        %v397 = vpack.c.b16 %v387, %v386
        %v398 = vpack.c.b16 %v389, %v388
        %v399 = vpack.c.b16 %v391, %v390
        %408 = vmatprep.subr.bf16.mxu0 0
        %409 = vmatpush1.bf16.msra.mxu0 %v392
        %410 = vmatprep.subr.bf16.mxu0 0
        %411 = vmatpush1.bf16.msra.mxu0 %v393
        %412 = vmatprep.subr.bf16.mxu0 0
        %413 = vmatpush1.bf16.msra.mxu0 %v394
        %414 = vmatprep.subr.bf16.mxu0 0
        %415 = vmatpush1.bf16.msra.mxu0 %v395
        %416 = vmatprep.subr.bf16.mxu0 0
        %417 = vmatpush1.bf16.msra.mxu0 %v396
        %418 = vmatprep.subr.bf16.mxu0 0
        %419 = vmatpush1.bf16.msra.mxu0 %v397
        %420 = vmatprep.subr.bf16.mxu0 0
        %421 = vmatpush1.bf16.msra.mxu0 %v398
        %422 = vmatprep.subr.bf16.mxu0 0
        %423 = vmatpush1.bf16.msra.mxu0 %v399
        %424 = vmatprep.subr.bf16.mxu0 0
        %425 = vmatpush1.bf16.msra.mxu0 0
        %426 = vmatprep.subr.bf16.mxu0 0
        %427 = vmatpush1.bf16.msra.mxu0 0
        %428 = vmatprep.subr.bf16.mxu0 0
        %429 = vmatpush1.bf16.msra.mxu0 0
        %430 = vmatprep.subr.bf16.mxu0 0
        %431 = vmatpush1.bf16.msra.mxu0 0
        %432 = vmatprep.subr.bf16.mxu0 0
        %433 = vmatpush1.bf16.msra.mxu0 0
        %434 = vmatprep.subr.bf16.mxu0 0
        %435 = vmatpush1.bf16.msra.mxu0 0
        %436 = vmatprep.subr.bf16.mxu0 0
        %437 = vmatpush1.bf16.msra.mxu0 0
        %438 = vmatprep.subr.bf16.mxu0 0
        %439 = vmatpush1.bf16.msra.mxu0 0
        %440 = vmatprep.mubr.bf16.mxu0 0
        %441 = vmatmul.mubr.bf16.gmra.mrb[0].mxu0 %v328
        %v442 = vpop.f32.mrb[0].mxu0
        %v443 = vadd.f32 0.0, %v442
        %v444 = vpop.f32.mrb[0].mxu0
        %v445 = vpop.f32.mrb[0].mxu0
        %v446 = vadd.f32 0.0, %v445
        %v447 = vpop.f32.mrb[0].mxu0
        %448 = vmatprep.mubr.bf16.mxu0 0
        %449 = vmatmul.mubr.bf16.gmra.mrb[0].mxu0 %v329
        %v450 = vpop.f32.mrb[0].mxu0
        %v451 = vadd.f32 0.0, %v450
        %v452 = vpop.f32.mrb[0].mxu0
        %v453 = vpop.f32.mrb[0].mxu0
        %v454 = vadd.f32 0.0, %v453
        %v455 = vpop.f32.mrb[0].mxu0
        %456 = vmatprep.mubr.bf16.mxu0 0
        %457 = vmatmul.mubr.bf16.gmra.mrb[0].mxu0 %v330
        %v458 = vpop.f32.mrb[0].mxu0
        %v459 = vadd.f32 0.0, %v458
        %v460 = vpop.f32.mrb[0].mxu0
        %v461 = vpop.f32.mrb[0].mxu0
        %v462 = vadd.f32 0.0, %v461
        %v463 = vpop.f32.mrb[0].mxu0
        %464 = vmatprep.mubr.bf16.mxu0 0
        %465 = vmatmul.mubr.bf16.gmra.mrb[0].mxu0 %v331
        %v466 = vpop.f32.mrb[0].mxu0
        %v467 = vadd.f32 0.0, %v466
        %v468 = vpop.f32.mrb[0].mxu0
        %v469 = vpop.f32.mrb[0].mxu0
        %v470 = vadd.f32 0.0, %v469
        %v471 = vpop.f32.mrb[0].mxu0
        %472 = vmatprep.mubr.bf16.mxu0 0
        %473 = vmatmul.mubr.bf16.gmra.mrb[0].mxu0 %v332
        %v474 = vpop.f32.mrb[0].mxu0
        %v475 = vadd.f32 0.0, %v474
        %v476 = vpop.f32.mrb[0].mxu0
        %v477 = vpop.f32.mrb[0].mxu0
        %v478 = vadd.f32 0.0, %v477
        %v479 = vpop.f32.mrb[0].mxu0
        %480 = vmatprep.mubr.bf16.mxu0 0
        %481 = vmatmul.mubr.bf16.gmra.mrb[0].mxu0 %v333
        %v482 = vpop.f32.mrb[0].mxu0
        %v483 = vadd.f32 0.0, %v482
        %v484 = vpop.f32.mrb[0].mxu0
        %v485 = vpop.f32.mrb[0].mxu0
        %v486 = vadd.f32 0.0, %v485
        %v487 = vpop.f32.mrb[0].mxu0
        %488 = vmatprep.mubr.bf16.mxu0 0
        %489 = vmatmul.mubr.bf16.gmra.mrb[0].mxu0 %v334
        %v490 = vpop.f32.mrb[0].mxu0
        %v491 = vadd.f32 0.0, %v490
        %v492 = vpop.f32.mrb[0].mxu0
        %v493 = vpop.f32.mrb[0].mxu0
        %v494 = vadd.f32 0.0, %v493
        %v495 = vpop.f32.mrb[0].mxu0
        %496 = vmatprep.mubr.bf16.mxu0 0
        %497 = vmatmul.mubr.bf16.gmra.mrb[0].mxu0 %v335
        %v498 = vpop.f32.mrb[0].mxu0
        %v499 = vadd.f32 0.0, %v498
        %v500 = vpop.f32.mrb[0].mxu0
        %v501 = vpop.f32.mrb[0].mxu0
        %v502 = vadd.f32 0.0, %v501
        %v503 = vpop.f32.mrb[0].mxu0
        %504 = vmatprep.mubr.bf16.mxu0 0
        %505 = vmatmul.mubr.bf16.gmra.mrb[0].mxu0 %v336
        %v506 = vpop.f32.mrb[0].mxu0
        %v507 = vadd.f32 0.0, %v506
        %v508 = vpop.f32.mrb[0].mxu0
        %v509 = vpop.f32.mrb[0].mxu0
        %v510 = vadd.f32 0.0, %v509
        %v511 = vpop.f32.mrb[0].mxu0
        %512 = vmatprep.mubr.bf16.mxu0 0
        %513 = vmatmul.mubr.bf16.gmra.mrb[0].mxu0 %v337
        %v514 = vpop.f32.mrb[0].mxu0
        %v515 = vadd.f32 0.0, %v514
        %v516 = vpop.f32.mrb[0].mxu0
        %v517 = vpop.f32.mrb[0].mxu0
        %v518 = vadd.f32 0.0, %v517
        %v519 = vpop.f32.mrb[0].mxu0
        %520 = vmatprep.mubr.bf16.mxu0 0
        %521 = vmatmul.mubr.bf16.gmra.mrb[0].mxu0 %v338
        %v522 = vpop.f32.mrb[0].mxu0
        %v523 = vadd.f32 0.0, %v522
        %v524 = vpop.f32.mrb[0].mxu0
        %v525 = vpop.f32.mrb[0].mxu0
        %v526 = vadd.f32 0.0, %v525
        %v527 = vpop.f32.mrb[0].mxu0
        %528 = vmatprep.mubr.bf16.mxu0 0
        %529 = vmatmul.mubr.bf16.gmra.mrb[0].mxu0 %v339
        %v530 = vpop.f32.mrb[0].mxu0
        %v531 = vadd.f32 0.0, %v530
        %v532 = vpop.f32.mrb[0].mxu0
        %v533 = vpop.f32.mrb[0].mxu0
        %v534 = vadd.f32 0.0, %v533
        %v535 = vpop.f32.mrb[0].mxu0
        %536 = vmatprep.mubr.bf16.mxu0 0
        %537 = vmatmul.mubr.bf16.gmra.mrb[0].mxu0 %v340
        %v538 = vpop.f32.mrb[0].mxu0
        %v539 = vadd.f32 0.0, %v538
        %v540 = vpop.f32.mrb[0].mxu0
        %v541 = vpop.f32.mrb[0].mxu0
        %v542 = vadd.f32 0.0, %v541
        %v543 = vpop.f32.mrb[0].mxu0
        %544 = vmatprep.mubr.bf16.mxu0 0
        %545 = vmatmul.mubr.bf16.gmra.mrb[0].mxu0 %v341
        %v546 = vpop.f32.mrb[0].mxu0
        %v547 = vadd.f32 0.0, %v546
        %v548 = vpop.f32.mrb[0].mxu0
        %v549 = vpop.f32.mrb[0].mxu0
        %v550 = vadd.f32 0.0, %v549
        %v551 = vpop.f32.mrb[0].mxu0
        %552 = vmatprep.mubr.bf16.mxu0 0
        %553 = vmatmul.mubr.bf16.gmra.mrb[0].mxu0 %v342
        %v554 = vpop.f32.mrb[0].mxu0
        %v555 = vadd.f32 0.0, %v554
        %v556 = vpop.f32.mrb[0].mxu0
        %v557 = vpop.f32.mrb[0].mxu0
        %v558 = vadd.f32 0.0, %v557
        %v559 = vpop.f32.mrb[0].mxu0
        %560 = vmatprep.mubr.bf16.mxu0 0
        %561 = vmatmul.mubr.bf16.gmra.mrb[0].mxu0 %v343
        %v562 = vpop.f32.mrb[0].mxu0
        %v563 = vadd.f32 0.0, %v562
        %v564 = vpop.f32.mrb[0].mxu0
        %v565 = vpop.f32.mrb[0].mxu0
        %v566 = vadd.f32 0.0, %v565
        %v567 = vpop.f32.mrb[0].mxu0
        %568 = vdwg.mxu0
        %v569 = vadd.f32 %v443, %v446
        %v570 = vadd.f32 %v569, %v451
        %v571 = vadd.f32 %v570, %v454
        %v572 = vadd.f32 %v571, %v459
        %v573 = vadd.f32 %v572, %v462
        %v574 = vadd.f32 %v573, %v467
        %v575 = vadd.f32 %v574, %v470
        %v576 = vadd.f32 %v575, %v475
        %v577 = vadd.f32 %v576, %v478
        %v578 = vadd.f32 %v577, %v483
        %v579 = vadd.f32 %v578, %v486
        %v580 = vadd.f32 %v579, %v491
        %v581 = vadd.f32 %v580, %v494
        %v582 = vadd.f32 %v581, %v499
        %v583 = vadd.f32 %v582, %v502
        %v584 = vadd.f32 %v583, %v507
        %v585 = vadd.f32 %v584, %v510
        %v586 = vadd.f32 %v585, %v515
        %v587 = vadd.f32 %v586, %v518
        %v588 = vadd.f32 %v587, %v523
        %v589 = vadd.f32 %v588, %v526
        %v590 = vadd.f32 %v589, %v531
        %v591 = vadd.f32 %v590, %v534
        %v592 = vadd.f32 %v591, %v539
        %v593 = vadd.f32 %v592, %v542
        %v594 = vadd.f32 %v593, %v547
        %v595 = vadd.f32 %v594, %v550
        %v596 = vadd.f32 %v595, %v555
        %v597 = vadd.f32 %v596, %v558
        %v598 = vadd.f32 %v597, %v563
        %v599 = vadd.f32 %v598, %v566
        %v600 = vrot.slane %v599, 4
        %v601 = vadd.f32 %v599, %v600
        %v602 = vrot.slane %v601, 2
        %v603 = vadd.f32 %v601, %v602
        %v604 = vrot.slane %v603, 1
        %v605 = vadd.f32 %v603, %v604
        %v606 = vmul.f32 %v443, %v443
        %v607 = vmul.f32 %v446, %v446
        %v608 = vmul.f32 %v451, %v451
        %v609 = vmul.f32 %v454, %v454
        %v610 = vmul.f32 %v459, %v459
        %v611 = vmul.f32 %v462, %v462
        %v612 = vmul.f32 %v467, %v467
        %v613 = vmul.f32 %v470, %v470
        %v614 = vmul.f32 %v475, %v475
        %v615 = vmul.f32 %v478, %v478
        %v616 = vmul.f32 %v483, %v483
        %v617 = vmul.f32 %v486, %v486
        %v618 = vmul.f32 %v491, %v491
        %v619 = vmul.f32 %v494, %v494
        %v620 = vmul.f32 %v499, %v499
        %v621 = vmul.f32 %v502, %v502
        %v622 = vmul.f32 %v507, %v507
        %v623 = vmul.f32 %v510, %v510
        %v624 = vmul.f32 %v515, %v515
        %v625 = vmul.f32 %v518, %v518
        %v626 = vmul.f32 %v523, %v523
        %v627 = vmul.f32 %v526, %v526
        %v628 = vmul.f32 %v531, %v531
        %v629 = vmul.f32 %v534, %v534
        %v630 = vmul.f32 %v539, %v539
        %v631 = vmul.f32 %v542, %v542
        %v632 = vmul.f32 %v547, %v547
        %v633 = vmul.f32 %v550, %v550
        %v634 = vmul.f32 %v555, %v555
        %v635 = vmul.f32 %v558, %v558
        %v636 = vmul.f32 %v563, %v563
        %v637 = vmul.f32 %v566, %v566
        %v638 = vadd.f32 %v606, %v607
        %v639 = vadd.f32 %v638, %v608
        %v640 = vadd.f32 %v639, %v609
        %v641 = vadd.f32 %v640, %v610
        %v642 = vadd.f32 %v641, %v611
        %v643 = vadd.f32 %v642, %v612
        %v644 = vadd.f32 %v643, %v613
        %v645 = vadd.f32 %v644, %v614
        %v646 = vadd.f32 %v645, %v615
        %v647 = vadd.f32 %v646, %v616
        %v648 = vadd.f32 %v647, %v617
        %v649 = vadd.f32 %v648, %v618
        %v650 = vadd.f32 %v649, %v619
        %v651 = vadd.f32 %v650, %v620
        %v652 = vadd.f32 %v651, %v621
        %v653 = vadd.f32 %v652, %v622
        %v654 = vadd.f32 %v653, %v623
        %v655 = vadd.f32 %v654, %v624
        %v656 = vadd.f32 %v655, %v625
        %v657 = vadd.f32 %v656, %v626
        %v658 = vadd.f32 %v657, %v627
        %v659 = vadd.f32 %v658, %v628
        %v660 = vadd.f32 %v659, %v629
        %v661 = vadd.f32 %v660, %v630
        %v662 = vadd.f32 %v661, %v631
        %v663 = vadd.f32 %v662, %v632
        %v664 = vadd.f32 %v663, %v633
        %v665 = vadd.f32 %v664, %v634
        %v666 = vadd.f32 %v665, %v635
        %v667 = vadd.f32 %v666, %v636
        %v668 = vadd.f32 %v667, %v637
        %v669 = vrot.slane %v668, 4
        %v670 = vadd.f32 %v668, %v669
        %v671 = vrot.slane %v670, 2
        %v672 = vadd.f32 %v670, %v671
        %v673 = vrot.slane %v672, 1
        %v674 = vadd.f32 %v672, %v673
        %vm675 = vcmask 1040384
        %v676 = vsel %vm675, %v605, %v674
        %677 = vst [vmem:[%s214] sm:$0x3] %v676
        %v678 = vpack.c.bf16 %v446, %v443
        %v679 = vpack.c.bf16 %v454, %v451
        %v680 = vpack.c.bf16 %v462, %v459
        %v681 = vpack.c.bf16 %v470, %v467
        %v682 = vpack.c.bf16 %v478, %v475
        %v683 = vpack.c.bf16 %v486, %v483
        %v684 = vpack.c.bf16 %v494, %v491
        %v685 = vpack.c.bf16 %v502, %v499
        %v686 = vpack.c.bf16 %v510, %v507
        %v687 = vpack.c.bf16 %v518, %v515
        %v688 = vpack.c.bf16 %v526, %v523
        %v689 = vpack.c.bf16 %v534, %v531
        %v690 = vpack.c.bf16 %v542, %v539
        %v691 = vpack.c.bf16 %v550, %v547
        %v692 = vpack.c.bf16 %v558, %v555
        %v693 = vpack.c.bf16 %v566, %v563
        %v710 = vunpack.c.l.b16 %v678
        %v711 = vunpack.c.h.b16 %v678
        %v712 = vunpack.c.l.b16 %v679
        %v713 = vunpack.c.h.b16 %v679
        %v714 = vunpack.c.l.b16 %v680
        %v715 = vunpack.c.h.b16 %v680
        %v716 = vunpack.c.l.b16 %v681
        %v717 = vunpack.c.h.b16 %v681
        %v718 = vunpack.c.l.b16 %v682
        %v719 = vunpack.c.h.b16 %v682
        %v720 = vunpack.c.l.b16 %v683
        %v721 = vunpack.c.h.b16 %v683
        %v722 = vunpack.c.l.b16 %v684
        %v723 = vunpack.c.h.b16 %v684
        %v724 = vunpack.c.l.b16 %v685
        %v725 = vunpack.c.h.b16 %v685
        %v726 = vunpack.c.l.b16 %v686
        %v727 = vunpack.c.h.b16 %v686
        %v728 = vunpack.c.l.b16 %v687
        %v729 = vunpack.c.h.b16 %v687
        %v730 = vunpack.c.l.b16 %v688
        %v731 = vunpack.c.h.b16 %v688
        %v732 = vunpack.c.l.b16 %v689
        %v733 = vunpack.c.h.b16 %v689
        %v734 = vunpack.c.l.b16 %v690
        %v735 = vunpack.c.h.b16 %v690
        %v736 = vunpack.c.l.b16 %v691
        %v737 = vunpack.c.h.b16 %v691
        %v738 = vunpack.c.l.b16 %v692
        %v739 = vunpack.c.h.b16 %v692
        %v740 = vunpack.c.l.b16 %v693
        %v741 = vunpack.c.h.b16 %v693
        %v742 = vpack.c.b16 %v710, %v710
        %v743 = vpack.c.b16 %v711, %v711
        %v744 = vpack.c.b16 %v712, %v712
        %v745 = vpack.c.b16 %v713, %v713
        %v746 = vpack.c.b16 %v714, %v714
        %v747 = vpack.c.b16 %v715, %v715
        %v748 = vpack.c.b16 %v716, %v716
        %v749 = vpack.c.b16 %v717, %v717
        %v750 = vpack.c.b16 %v718, %v718
        %v751 = vpack.c.b16 %v719, %v719
        %v752 = vpack.c.b16 %v720, %v720
        %v753 = vpack.c.b16 %v721, %v721
        %v754 = vpack.c.b16 %v722, %v722
        %v755 = vpack.c.b16 %v723, %v723
        %v756 = vpack.c.b16 %v724, %v724
        %v757 = vpack.c.b16 %v725, %v725
        %v758 = vpack.c.b16 %v726, %v726
        %v759 = vpack.c.b16 %v727, %v727
        %v760 = vpack.c.b16 %v728, %v728
        %v761 = vpack.c.b16 %v729, %v729
        %v762 = vpack.c.b16 %v730, %v730
        %v763 = vpack.c.b16 %v731, %v731
        %v764 = vpack.c.b16 %v732, %v732
        %v765 = vpack.c.b16 %v733, %v733
        %v766 = vpack.c.b16 %v734, %v734
        %v767 = vpack.c.b16 %v735, %v735
        %v768 = vpack.c.b16 %v736, %v736
        %v769 = vpack.c.b16 %v737, %v737
        %v770 = vpack.c.b16 %v738, %v738
        %v771 = vpack.c.b16 %v739, %v739
        %v772 = vpack.c.b16 %v740, %v740
        %v773 = vpack.c.b16 %v741, %v741
        %806 = vst [vmem:[%s207] sm:$0xf] %v742
        %807 = vst [vmem:[%s207 + $0x4] sm:$0xf] %v743
        %808 = vst [vmem:[%s207 + $0x8] sm:$0xf] %v744
        %809 = vst [vmem:[%s207 + $0xc] sm:$0xf] %v745
        %810 = vst [vmem:[%s207 + $0x10] sm:$0xf] %v746
        %811 = vst [vmem:[%s207 + $0x14] sm:$0xf] %v747
        %812 = vst [vmem:[%s207 + $0x18] sm:$0xf] %v748
        %813 = vst [vmem:[%s207 + $0x1c] sm:$0xf] %v749
        %814 = vst [vmem:[%s207 + $0x20] sm:$0xf] %v750
        %815 = vst [vmem:[%s207 + $0x24] sm:$0xf] %v751
        %816 = vst [vmem:[%s207 + $0x28] sm:$0xf] %v752
        %817 = vst [vmem:[%s207 + $0x2c] sm:$0xf] %v753
        %818 = vst [vmem:[%s207 + $0x30] sm:$0xf] %v754
        %819 = vst [vmem:[%s207 + $0x34] sm:$0xf] %v755
        %820 = vst [vmem:[%s207 + $0x38] sm:$0xf] %v756
        %821 = vst [vmem:[%s207 + $0x3c] sm:$0xf] %v757
        %822 = vst [vmem:[%s207 + $0x40] sm:$0xf] %v758
        %823 = vst [vmem:[%s207 + $0x44] sm:$0xf] %v759
        %824 = vst [vmem:[%s207 + $0x48] sm:$0xf] %v760
        %825 = vst [vmem:[%s207 + $0x4c] sm:$0xf] %v761
        %826 = vst [vmem:[%s207 + $0x50] sm:$0xf] %v762
        %827 = vst [vmem:[%s207 + $0x54] sm:$0xf] %v763
        %828 = vst [vmem:[%s207 + $0x58] sm:$0xf] %v764
        %829 = vst [vmem:[%s207 + $0x5c] sm:$0xf] %v765
        %830 = vst [vmem:[%s207 + $0x60] sm:$0xf] %v766
        %831 = vst [vmem:[%s207 + $0x64] sm:$0xf] %v767
        %832 = vst [vmem:[%s207 + $0x68] sm:$0xf] %v768
        %833 = vst [vmem:[%s207 + $0x6c] sm:$0xf] %v769
        %834 = vst [vmem:[%s207 + $0x70] sm:$0xf] %v770
        %835 = vst [vmem:[%s207 + $0x74] sm:$0xf] %v771
        %836 = vst [vmem:[%s207 + $0x78] sm:$0xf] %v772
        %837 = vst [vmem:[%s207 + $0x7c] sm:$0xf] %v773
        %s838 = sand.u32 %s80, 1
        %s839 = scalar_lea.sflag [#allocation4], %s838
        %s840 = sand.u32 %s80, 1
        %s841 = smul.addr %s840, 128
        %s842 = scalar_lea.vmem [#allocation7], %s841
        %s843 = sand.u32 %s106, 1
        %s844 = scalar_lea.sflag [#allocation9], %s843
        %s845 = sand.u32 %s106, 1
        %s846 = smul.addr %s845, 2
        %s847 = scalar_lea.vmem [#allocation8], %s846
        // Predicated region
        $region37: #{tpu_custom_call.1} parent=27 // pred_check
          %p848 = pneg %p90
        $region38: #{tpu_custom_call.1} parent=27 // pred_check_branch
          %850 = sbr.rel (%p848) target = $region40
        $region39: #{tpu_custom_call.1} parent=27 // pred_region
          %s852 = ssub.s32 2048, 2048
          %853 = vsyncadd %s839, %s852
          %s854 = smul.addr %s25, 32
          %s855 = smul.addr %s854, 64
          %s856 = scalar_lea.hbm %s2, %s855
          %s857 = sshll.u32 %s842, 4
          %s858 = int_to_ptr.vmem [resolvable:$true] %s857
          %863 = dma.vmem_to_hbm [thread:$0]  %s858, 2048, %s856, %s839, 64, 64, 4
        $region40: #{tpu_custom_call.1} parent=27 // pred_fallthru
          _
        // Predicated region
        $region41: #{tpu_custom_call.1} parent=27 // pred_check
          %p864 = pneg %p116
        $region42: #{tpu_custom_call.1} parent=27 // pred_check_branch
          %866 = sbr.rel (%p864) target = $region44
        $region43: #{tpu_custom_call.1} parent=27 // pred_region
          %s868 = ssub.s32 32, 32
          %869 = vsyncadd %s844, %s868
          %s870 = smul.addr %s25, 32
          %s871 = scalar_lea.hbm %s3, %s870
          %s873 = sshll.u32 %s847, 4
          %s874 = int_to_ptr.vmem [resolvable:$true] %s873
          %876 = dma.vmem_to_hbm [thread:$0]  %s874, 32, %s871, %s844
        $region44: #{tpu_custom_call.1} parent=27 // pred_fallthru
          _
      $region28: #{tpu_custom_call.1} parent=5 // pred_fallthru
        _
      %p877 = scmp.le.s32.totalorder 2, %s20
      // Predicated region
      $region45: #{tpu_custom_call.1} parent=5 // pred_check
        %p878 = pneg %p877
      $region46: #{tpu_custom_call.1} parent=5 // pred_check_branch
        %880 = sbr.rel (%p878) target = $region48
      $region47: #{tpu_custom_call.1} parent=5 // pred_region
        %s881 = ssub.s32 %s20, 2
        // Predicated region
        $region49: #{tpu_custom_call.1} parent=47 // pred_check
          %p882 = pneg %p96
        $region50: #{tpu_custom_call.1} parent=47 // pred_check_branch
          %884 = sbr.rel (%p882) target = $region52
        $region51: #{tpu_custom_call.1} parent=47 // pred_region
          %s885 = sand.u32 %s81, 1
          %s886 = scalar_lea.sflag [#allocation4], %s885
          %s887 = sand.u32 %s81, 1
          %s888 = smul.addr %s887, 128
          %s889 = scalar_lea.vmem [#allocation7], %s888
          %890 = dma.done %s886, 2048
        $region52: #{tpu_custom_call.1} parent=47 // pred_fallthru
          _
        // Predicated region
        $region53: #{tpu_custom_call.1} parent=47 // pred_check
          %p891 = pneg %p122
        $region54: #{tpu_custom_call.1} parent=47 // pred_check_branch
          %893 = sbr.rel (%p891) target = $region56
        $region55: #{tpu_custom_call.1} parent=47 // pred_region
          %s894 = sand.u32 %s107, 1
          %s895 = scalar_lea.sflag [#allocation9], %s894
          %s896 = sand.u32 %s107, 1
          %s897 = smul.addr %s896, 2
          %s898 = scalar_lea.vmem [#allocation8], %s897
          %899 = dma.done %s895, 32
        $region56: #{tpu_custom_call.1} parent=47 // pred_fallthru
          _
      $region48: #{tpu_custom_call.1} parent=5 // pred_fallthru
        _
    $region6: #{tpu_custom_call.1} parent=1 // loop_footer
      %s24 = sadd.s32 1, %s20
    $region7: #{tpu_custom_call.1} parent=1 // loop_footer_branch
      %19 = sbr.rel target = $region3
    $region8: #{tpu_custom_call.1} parent=1 // loop_exit
      _
    %900 = vsyncpa [#allocation3], 1
    %s901 = scalar_lea.sflag [#allocation3], 1
    %902 = vsyncpa %s901, 1
    %903 = vsyncpa [#allocation6], 1
    %904 = vsyncpa [#allocation4], 1
    %s905 = scalar_lea.sflag [#allocation4], 1
    %906 = vsyncpa %s905, 1
    %907 = vsyncpa [#allocation9], 1
    %s908 = scalar_lea.sflag [#allocation9], 1
    %909 = vsyncpa %s908, 1

</llo_original>
